<compile_context>
chip_gen: v7x
topology: tpu7x:2x2x1
jax: 0.10.0
libtpu: 0.0.40
codegen_flags: <defaults>
</compile_context>

<pallas_src>
import functools

import jax
import jax.numpy as jnp
from jax.experimental import pallas as pl
from jax.experimental.pallas import tpu as pltpu

BN_EPS = 1e-5
LANE = 128      # TPU lane width  (last dim of every VMEM tile)
SUBLANE = 8     # TPU sublane width


def _round_up(n, m):
    return (n + m - 1) // m * m


def _cdiv(a, b):
    return (a + b - 1) // b


# ---------------------------------------------------------------------------
# Fused kernel: all hidden layers + final projection in one body
# ---------------------------------------------------------------------------
def _fused_mlp_kernel(x_ref, w0_ref, w_ref, b_ref, wo_ref, bo_ref, o_ref, *, num_layers):
    """o[0, :] = (relu(...relu(x @ W'_0 + b'_0)...) @ w_out + b_out), batch packed along lanes."""
    # layer 0: [TB, din] @ [din, 128]  (bf16 operands, f32 accumulation)
    h = jnp.dot(x_ref[...].astype(jnp.bfloat16), w0_ref[...],
                preferred_element_type=jnp.float32)
    h = jnp.maximum(h + b_ref[0], 0.0)                               # [TB, 128] f32

    # layers 1..L-1 (static unroll; L is small)
    for l in range(1, num_layers):
        y = jnp.dot(h.astype(jnp.bfloat16), w_ref[l - 1],
                    preferred_element_type=jnp.float32) + b_ref[l]
        h = jnp.maximum(y, 0.0)

    # final projection against h^T so the result is lane-dense (batch along lanes):
    #   [1, 128] @ [128, TB] -> [1, TB]   (transpose goes to the otherwise-idle XLU)
    hT = h.T
    o = jnp.dot(wo_ref[...], hT, preferred_element_type=jnp.float32) + bo_ref[...]
    o_ref[...] = o.astype(o_ref.dtype)                               # unmasked lane-dense store


# ---------------------------------------------------------------------------
# Parameter prep: fold BatchNorm into Linear, pad + stack to lane-dense slabs
# ---------------------------------------------------------------------------
def fold_and_pack_params(hidden_params, out_params, input_dim, hidden_dim):
    """Returns (w0 [din,128] bf16, w_rest [max(L-1,1),128,128] bf16,
                b_stack [L,1,128] f32, w_out_row [1,128] f32, b_out [1,1] f32)."""
    L = len(hidden_params)
    assert input_dim <= LANE, "fold_and_pack_params assumes input_dim <= 128"
    assert hidden_dim <= LANE, "fold_and_pack_params assumes hidden_dim <= 128"

    def fold(p):
        inv = p["gamma"] * jax.lax.rsqrt(p["var"] + BN_EPS)           # [1, hidden]
        return p["w"] * inv, (p["b"] - p["mean"]) * inv + p["beta"]

    # layer 0 keeps the true input width (no 128-lane padding of x on the host)
    w0f, b0f = fold(hidden_params[0])
    w0 = jnp.zeros((input_dim, LANE), jnp.float32).at[:, :hidden_dim].set(w0f)
    b_stack = jnp.zeros((L, 1, LANE), jnp.float32).at[0, :, :hidden_dim].set(b0f)

    # layers 1..L-1 stacked into one slab (dummy size-1 slab if L == 1)
    Lr = max(L - 1, 1)
    w_rest = jnp.zeros((Lr, LANE, LANE), jnp.float32)
    for l in range(1, L):
        wf, bf = fold(hidden_params[l])
        w_rest = w_rest.at[l - 1, :hidden_dim, :hidden_dim].set(wf)
        b_stack = b_stack.at[l, :, :hidden_dim].set(bf)

    # final projection stored as a [1, 128] row (applied to h^T in-kernel), scalar bias as [1, 1]
    w_out_row = jnp.zeros((1, LANE), jnp.float32).at[:, :hidden_dim].set(out_params["w"].T)
    b_out = out_params["b"].reshape(1, 1).astype(jnp.float32)

    return (w0.astype(jnp.bfloat16), w_rest.astype(jnp.bfloat16),
            b_stack, w_out_row, b_out)


# ---------------------------------------------------------------------------
# Batch-tile selection: lane-aligned, minimal padding waste, >=2 tiles for v7x
# ---------------------------------------------------------------------------
def _choose_batch_tile(B, max_tile):
    max_tile = max(int(max_tile), LANE)
    b = _round_up(B, LANE)
    min_tiles = 2 if b >= 2 * LANE else 1          # keep both v7x TensorCores busy when possible
    n = max(_cdiv(b, max_tile), min_tiles)
    tb = _round_up(_cdiv(b, n), LANE)
    n = _cdiv(b, tb)
    return tb, tb * n, n


# ---------------------------------------------------------------------------
# pallas_call wrapper
# ---------------------------------------------------------------------------
@functools.partial(jax.jit, static_argnames=("batch_tile",))
def regression_net_forward(x, w0, w_rest, b_stack, w_out_row, b_out, *, batch_tile=1024):
    B, din = x.shape
    L = b_stack.shape[0]

    TB, B_pad, n_tiles = _choose_batch_tile(B, batch_tile)

    x_p = x if B_pad == B else jnp.zeros((B_pad, din), x.dtype).at[:B].set(x)

    kernel = functools.partial(_fused_mlp_kernel, num_layers=L)
    out = pl.pallas_call(
        kernel,
        out_shape=jax.ShapeDtypeStruct((1, B_pad), jnp.float32),
        grid_spec=pltpu.PrefetchScalarGridSpec(
            num_scalar_prefetch=0,
            grid=(n_tiles,),
            in_specs=[
                pl.BlockSpec((TB, din), lambda i: (i, 0)),          # x tile (true feature width)
                pl.BlockSpec(w0.shape, lambda i: (0, 0)),           # layer-0 folded weight (replicated)
                pl.BlockSpec(w_rest.shape, lambda i: (0, 0, 0)),    # stacked folded weights (replicated)
                pl.BlockSpec(b_stack.shape, lambda i: (0, 0, 0)),   # stacked folded biases  (replicated)
                pl.BlockSpec(w_out_row.shape, lambda i: (0, 0)),    # final projection row   (replicated)
                pl.BlockSpec(b_out.shape, lambda i: (0, 0)),        # final projection bias  (replicated)
            ],
            out_specs=pl.BlockSpec((1, TB), lambda i: (0, i)),      # lane-dense [1, TB] slab per tile
        ),
        compiler_params=pltpu.CompilerParams(
            dimension_semantics=("parallel",),                       # shard batch tiles across TCs (v7x)
        ),
    )(x_p, w0, w_rest, b_stack, w_out_row, b_out)

    # real results live in the first B lanes of the single output row; .squeeze() matches torch
    return jnp.squeeze(out[0, :B])


# ---------------------------------------------------------------------------
# Synthetic parameters (same shapes as the torch module) + pure-JAX reference
# ---------------------------------------------------------------------------
def init_params(key, input_dim, hidden_dim, num_layers):
    params = []
    dims_in = [input_dim] + [hidden_dim] * (num_layers - 1)
    for din in dims_in:
        key, k_w, k_b, k_g, k_be, k_m, k_v = jax.random.split(key, 7)
        params.append({
            # stored pre-transposed: [din, hidden_dim]
            "w": jax.random.normal(k_w, (din, hidden_dim), jnp.float32) * 0.1,
            "b": jax.random.normal(k_b, (1, hidden_dim), jnp.float32) * 0.1,
            "gamma": 1.0 + 0.1 * jax.random.normal(k_g, (1, hidden_dim), jnp.float32),
            "beta": 0.1 * jax.random.normal(k_be, (1, hidden_dim), jnp.float32),
            "mean": 0.1 * jax.random.normal(k_m, (1, hidden_dim), jnp.float32),
            "var": jnp.abs(1.0 + 0.1 * jax.random.normal(k_v, (1, hidden_dim), jnp.float32)),
        })
    key, k_w, k_b = jax.random.split(key, 3)
    out_layer = {
        "w": jax.random.normal(k_w, (hidden_dim, 1), jnp.float32) * 0.1,
        "b": jax.random.normal(k_b, (1, 1), jnp.float32) * 0.1,
    }
    return params, out_layer


def reference_forward(x, hidden_params, out_params):
    h = x
    for p in hidden_params:
        y = h @ p["w"] + p["b"]
        y = (y - p["mean"]) * jax.lax.rsqrt(p["var"] + BN_EPS) * p["gamma"] + p["beta"]
        h = jnp.maximum(y, 0.0)
    return jnp.squeeze(h @ out_params["w"] + out_params["b"])


if __name__ == "__main__":
    batch = 8
    input_dim = 16
    hidden_dim = 32
    num_layers = 3
    dropout = 0.2  # identity in eval-mode forward

    key = jax.random.PRNGKey(0)
    key, kx = jax.random.split(key)
    x = jax.random.normal(kx, (batch, input_dim), jnp.float32)

    hidden_params, out_params = init_params(key, input_dim, hidden_dim, num_layers)

    # Fold BN into Linear and pack to lane-dense (bf16) slabs once, outside the kernel.
    packed = fold_and_pack_params(hidden_params, out_params, input_dim, hidden_dim)

    # small batch (single tile)
    out = regression_net_forward(x, *packed)
    out = jax.block_until_ready(out)
    ref = reference_forward(x, hidden_params, out_params)
    assert out.shape == (batch,), out.shape
    # bf16 matmuls -> loosened tolerance vs. the f32 reference
    assert jnp.allclose(out, ref, atol=1e-2, rtol=1e-2), (out, ref)

    # larger batch exercising a multi-tile ("parallel") grid + padded-row slicing
    key, kx2 = jax.random.split(key)
    x2 = jax.random.normal(kx2, (200, input_dim), jnp.float32)
    out2 = jax.block_until_ready(regression_net_forward(x2, *packed))
    ref2 = reference_forward(x2, hidden_params, out_params)
    assert out2.shape == (200,), out2.shape
    assert jnp.allclose(out2, ref2, atol=1e-2, rtol=1e-2), float(jnp.max(jnp.abs(out2 - ref2)))

    print("KERNEL_OK")
</pallas_src>

<mosaic_0001>
module attributes {stable_mosaic.version = 11 : i64} {
  func.func @_fused_mlp_kernel(%arg0: i32, %arg1: memref<128x16xf32, #tpu.memory_space<vmem>>, %arg2: memref<16x128xbf16, #tpu.memory_space<vmem>>, %arg3: memref<2x128x128xbf16, #tpu.memory_space<vmem>>, %arg4: memref<3x1x128xf32, #tpu.memory_space<vmem>>, %arg5: memref<1x128xf32, #tpu.memory_space<vmem>>, %arg6: memref<1x1xf32, #tpu.memory_space<vmem>>, %arg7: memref<1x128xf32, #tpu.memory_space<vmem>>) attributes {dimension_semantics = [#tpu.dimension_semantics<parallel>], iteration_bounds = array<i64: 1>, scalar_prefetch = 0 : i64, scratch_operands = 0 : i64, tpu.core_type = #tpu.core_type<tc>, window_params = [{transform_indices = @transform_0, window_bounds = array<i64: 128, 16>}, {pipeline_mode = #tpu.pipeline_mode<synchronous>, transform_indices = @transform_1, window_bounds = array<i64: 16, 128>}, {pipeline_mode = #tpu.pipeline_mode<synchronous>, transform_indices = @transform_2, window_bounds = array<i64: 2, 128, 128>}, {pipeline_mode = #tpu.pipeline_mode<synchronous>, transform_indices = @transform_3, window_bounds = array<i64: 3, 1, 128>}, {pipeline_mode = #tpu.pipeline_mode<synchronous>, transform_indices = @transform_4, window_bounds = array<i64: 1, 128>}, {pipeline_mode = #tpu.pipeline_mode<synchronous>, transform_indices = @transform_5, window_bounds = array<i64: 1, 1>}, {transform_indices = @transform_6, window_bounds = array<i64: 1, 128>}]} {
    %c0 = arith.constant 0 : index
    %c0_0 = arith.constant 0 : index
    %0 = vector.load %arg1[%c0, %c0_0] : memref<128x16xf32, #tpu.memory_space<vmem>>, vector<128x16xf32>
    %1 = arith.truncf %0 : vector<128x16xf32> to vector<128x16xbf16>
    %c0_1 = arith.constant 0 : index
    %c0_2 = arith.constant 0 : index
    %2 = vector.load %arg2[%c0_1, %c0_2] : memref<16x128xbf16, #tpu.memory_space<vmem>>, vector<16x128xbf16>
    %cst = arith.constant dense<0.000000e+00> : vector<128x128xf32>
    %3 = tpu.matmul %1, %2, %cst {dimension_numbers = #tpu.dot_dimension_numbers<[1], [0], [0], [1], [0, 0, 1, 1], [], []>} : vector<128x16xbf16>, vector<16x128xbf16>, vector<128x128xf32> -> vector<128x128xf32>
    %c0_3 = arith.constant 0 : index
    %c0_4 = arith.constant 0 : index
    %c0_5 = arith.constant 0 : index
    %4 = vector.load %arg4[%c0_3, %c0_4, %c0_5] : memref<3x1x128xf32, #tpu.memory_space<vmem>>, vector<1x1x128xf32>
    %5 = vector.shape_cast %4 : vector<1x1x128xf32> to vector<1x128xf32>
    %6 = vector.broadcast %5 : vector<1x128xf32> to vector<128x128xf32>
    %7 = arith.addf %3, %6 : vector<128x128xf32>
    %cst_6 = arith.constant 0.000000e+00 : f32
    %8 = vector.broadcast %cst_6 : f32 to vector<128x128xf32>
    %9 = arith.maximumf %7, %8 : vector<128x128xf32>
    %10 = arith.truncf %9 : vector<128x128xf32> to vector<128x128xbf16>
    %c0_7 = arith.constant 0 : index
    %c0_8 = arith.constant 0 : index
    %c0_9 = arith.constant 0 : index
    %11 = vector.load %arg3[%c0_7, %c0_8, %c0_9] : memref<2x128x128xbf16, #tpu.memory_space<vmem>>, vector<1x128x128xbf16>
    %12 = vector.shape_cast %11 : vector<1x128x128xbf16> to vector<128x128xbf16>
    %cst_10 = arith.constant dense<0.000000e+00> : vector<128x128xf32>
    %13 = tpu.matmul %10, %12, %cst_10 {dimension_numbers = #tpu.dot_dimension_numbers<[1], [0], [0], [1], [0, 0, 1, 1], [], []>} : vector<128x128xbf16>, vector<128x128xbf16>, vector<128x128xf32> -> vector<128x128xf32>
    %c1 = arith.constant 1 : index
    %c0_11 = arith.constant 0 : index
    %c0_12 = arith.constant 0 : index
    %14 = vector.load %arg4[%c1, %c0_11, %c0_12] : memref<3x1x128xf32, #tpu.memory_space<vmem>>, vector<1x1x128xf32>
    %15 = vector.shape_cast %14 : vector<1x1x128xf32> to vector<1x128xf32>
    %16 = vector.broadcast %15 : vector<1x128xf32> to vector<128x128xf32>
    %17 = arith.addf %13, %16 : vector<128x128xf32>
    %cst_13 = arith.constant 0.000000e+00 : f32
    %18 = vector.broadcast %cst_13 : f32 to vector<128x128xf32>
    %19 = arith.maximumf %17, %18 : vector<128x128xf32>
    %20 = arith.truncf %19 : vector<128x128xf32> to vector<128x128xbf16>
    %c1_14 = arith.constant 1 : index
    %c0_15 = arith.constant 0 : index
    %c0_16 = arith.constant 0 : index
    %21 = vector.load %arg3[%c1_14, %c0_15, %c0_16] : memref<2x128x128xbf16, #tpu.memory_space<vmem>>, vector<1x128x128xbf16>
    %22 = vector.shape_cast %21 : vector<1x128x128xbf16> to vector<128x128xbf16>
    %cst_17 = arith.constant dense<0.000000e+00> : vector<128x128xf32>
    %23 = tpu.matmul %20, %22, %cst_17 {dimension_numbers = #tpu.dot_dimension_numbers<[1], [0], [0], [1], [0, 0, 1, 1], [], []>} : vector<128x128xbf16>, vector<128x128xbf16>, vector<128x128xf32> -> vector<128x128xf32>
    %c2 = arith.constant 2 : index
    %c0_18 = arith.constant 0 : index
    %c0_19 = arith.constant 0 : index
    %24 = vector.load %arg4[%c2, %c0_18, %c0_19] : memref<3x1x128xf32, #tpu.memory_space<vmem>>, vector<1x1x128xf32>
    %25 = vector.shape_cast %24 : vector<1x1x128xf32> to vector<1x128xf32>
    %26 = vector.broadcast %25 : vector<1x128xf32> to vector<128x128xf32>
    %27 = arith.addf %23, %26 : vector<128x128xf32>
    %cst_20 = arith.constant 0.000000e+00 : f32
    %28 = vector.broadcast %cst_20 : f32 to vector<128x128xf32>
    %29 = arith.maximumf %27, %28 : vector<128x128xf32>
    %30 = tpu.transpose %29, [1, 0] : vector<128x128xf32> -> vector<128x128xf32>
    %c0_21 = arith.constant 0 : index
    %c0_22 = arith.constant 0 : index
    %31 = vector.load %arg5[%c0_21, %c0_22] : memref<1x128xf32, #tpu.memory_space<vmem>>, vector<1x128xf32>
    %cst_23 = arith.constant dense<0.000000e+00> : vector<1x128xf32>
    %32 = tpu.matmul %31, %30, %cst_23 {dimension_numbers = #tpu.dot_dimension_numbers<[1], [0], [0], [1], [0, 0, 1, 1], [], []>} : vector<1x128xf32>, vector<128x128xf32>, vector<1x128xf32> -> vector<1x128xf32>
    %c0_24 = arith.constant 0 : index
    %c0_25 = arith.constant 0 : index
    %33 = vector.load %arg6[%c0_24, %c0_25] : memref<1x1xf32, #tpu.memory_space<vmem>>, vector<1x1xf32>
    %34 = vector.broadcast %33 : vector<1x1xf32> to vector<1x128xf32>
    %35 = arith.addf %32, %34 : vector<1x128xf32>
    %c0_26 = arith.constant 0 : index
    %c0_27 = arith.constant 0 : index
    %36 = vector.load %arg7[%c0_26, %c0_27] : memref<1x128xf32, #tpu.memory_space<vmem>>, vector<1x128xf32>
    tpu.vector_store %arg7[%c0_26, %c0_27], %35 {strides = array<i32>} : memref<1x128xf32, #tpu.memory_space<vmem>>, vector<1x128xf32>,
    return
  }
  func.func @transform_0(%arg0: i32) -> (i32, i32) {
    %c0_i32 = arith.constant 0 : i32
    %c0_i32_0 = arith.constant 0 : i32
    return %arg0, %c0_i32 : i32, i32
  }
  func.func @transform_1(%arg0: i32) -> (i32, i32) {
    %c0_i32 = arith.constant 0 : i32
    %c0_i32_0 = arith.constant 0 : i32
    %c0_i32_1 = arith.constant 0 : i32
    return %c0_i32, %c0_i32_0 : i32, i32
  }
  func.func @transform_2(%arg0: i32) -> (i32, i32, i32) {
    %c0_i32 = arith.constant 0 : i32
    %c0_i32_0 = arith.constant 0 : i32
    %c0_i32_1 = arith.constant 0 : i32
    %c0_i32_2 = arith.constant 0 : i32
    return %c0_i32, %c0_i32_0, %c0_i32_1 : i32, i32, i32
  }
  func.func @transform_3(%arg0: i32) -> (i32, i32, i32) {
    %c0_i32 = arith.constant 0 : i32
    %c0_i32_0 = arith.constant 0 : i32
    %c0_i32_1 = arith.constant 0 : i32
    %c0_i32_2 = arith.constant 0 : i32
    return %c0_i32, %c0_i32_0, %c0_i32_1 : i32, i32, i32
  }
  func.func @transform_4(%arg0: i32) -> (i32, i32) {
    %c0_i32 = arith.constant 0 : i32
    %c0_i32_0 = arith.constant 0 : i32
    %c0_i32_1 = arith.constant 0 : i32
    return %c0_i32, %c0_i32_0 : i32, i32
  }
  func.func @transform_5(%arg0: i32) -> (i32, i32) {
    %c0_i32 = arith.constant 0 : i32
    %c0_i32_0 = arith.constant 0 : i32
    %c0_i32_1 = arith.constant 0 : i32
    return %c0_i32, %c0_i32_0 : i32, i32
  }
  func.func @transform_6(%arg0: i32) -> (i32, i32) {
    %c0_i32 = arith.constant 0 : i32
    %c0_i32_0 = arith.constant 0 : i32
    return %c0_i32, %arg0 : i32, i32
  }
}

</mosaic_0001>

<llo_original>
// kernel: regression_net_forward.1
$region0: #{regression_net_forward.1}
  #allocation0 [shape = 'u32[]', space=smem, size = 0x4, offset = 0x4, fixed_abs, tag = 'smem constant byte address 0x4 - core index']
  #allocation1 [shape = 'u32[144,128]{1,0:T(1,128)}', space=vmem, size = 0x12000, scoped, tag = 'internal scratch']
  #allocation2 [shape = 'f32[1,1]{1,0:T(1,128)S(1)}', space=vmem, size = 0x200, scoped, tag = 'scoped memory for regression_net_forward.1']
  %s0 = inlined_call_operand.vmem [shape: f32[128,16], index: 0, kind: input, shape index: {}]
  %s1 = inlined_call_operand.vmem [shape: bf16[16,128], index: 1, kind: input, shape index: {}]
  %s2 = inlined_call_operand.vmem [shape: bf16[2,128,128], index: 2, kind: input, shape index: {}]
  %s3 = inlined_call_operand.vmem [shape: f32[3,1,128], index: 3, kind: input, shape index: {}]
  %s4 = inlined_call_operand.vmem [shape: f32[1,128], index: 4, kind: input, shape index: {}]
  %s5 = inlined_call_operand.<no memory space> [shape: f32[1,1], index: 5, kind: input, shape index: {}]
  %s6 = inlined_call_operand.vmem [shape: f32[1,128], index: 6, kind: output, shape index: {}]
  %s7 = sld [smem:[#allocation0]]
  $region34: #{regression_net_forward.1} parent=0
    _
  %s9 = ssub.s32 1, %s7
  %s10 = scalar_select 0, %s9, %s7
  %v11 = vstv %s5
  %12 = vst [vmem:[#allocation2] sm:$0x1] %v11
  // Predicated region
  $region2: #{regression_net_forward.1} parent=0 // pred_check
    _
  $region3: #{regression_net_forward.1} parent=0 // pred_check_branch
    %14 = sbr.rel (0) target = $region5
  $region4: #{regression_net_forward.1} parent=0 // pred_region
    _
  $region5: #{regression_net_forward.1} parent=0 // pred_fallthru
    _
  // Predicated region
  $region6: #{regression_net_forward.1} parent=0 // pred_check
    _
  $region7: #{regression_net_forward.1} parent=0 // pred_check_branch
    %16 = sbr.rel (0) target = $region9
  $region8: #{regression_net_forward.1} parent=0 // pred_region
    _
  $region9: #{regression_net_forward.1} parent=0 // pred_fallthru
    _
  // Predicated region
  $region10: #{regression_net_forward.1} parent=0 // pred_check
    _
  $region11: #{regression_net_forward.1} parent=0 // pred_check_branch
    %18 = sbr.rel (0) target = $region13
  $region12: #{regression_net_forward.1} parent=0 // pred_region
    _
  $region13: #{regression_net_forward.1} parent=0 // pred_fallthru
    _
  // Predicated region
  $region14: #{regression_net_forward.1} parent=0 // pred_check
    _
  $region15: #{regression_net_forward.1} parent=0 // pred_check_branch
    %20 = sbr.rel (0) target = $region17
  $region16: #{regression_net_forward.1} parent=0 // pred_region
    _
  $region17: #{regression_net_forward.1} parent=0 // pred_fallthru
    _
  // Predicated region
  $region18: #{regression_net_forward.1} parent=0 // pred_check
    _
  $region19: #{regression_net_forward.1} parent=0 // pred_check_branch
    %22 = sbr.rel (0) target = $region21
  $region20: #{regression_net_forward.1} parent=0 // pred_region
    _
  $region21: #{regression_net_forward.1} parent=0 // pred_fallthru
    _
  // Predicated region
  $region22: #{regression_net_forward.1} parent=0 // pred_check
    _
  $region23: #{regression_net_forward.1} parent=0 // pred_check_branch
    %24 = sbr.rel (0) target = $region25
  $region24: #{regression_net_forward.1} parent=0 // pred_region
    _
  $region25: #{regression_net_forward.1} parent=0 // pred_fallthru
    _
  %v26 = vld [vmem:[%s0] sm:$0xff]
  %v27 = vld [vmem:[%s0 + $0x8] sm:$0xff]
  %v28 = vld [vmem:[%s0 + $0x10] sm:$0xff]
  %v29 = vld [vmem:[%s0 + $0x18] sm:$0xff]
  %v30 = vld [vmem:[%s0 + $0x20] sm:$0xff]
  %v31 = vld [vmem:[%s0 + $0x28] sm:$0xff]
  %v32 = vld [vmem:[%s0 + $0x30] sm:$0xff]
  %v33 = vld [vmem:[%s0 + $0x38] sm:$0xff]
  %v34 = vld [vmem:[%s0 + $0x40] sm:$0xff]
  %v35 = vld [vmem:[%s0 + $0x48] sm:$0xff]
  %v36 = vld [vmem:[%s0 + $0x50] sm:$0xff]
  %v37 = vld [vmem:[%s0 + $0x58] sm:$0xff]
  %v38 = vld [vmem:[%s0 + $0x60] sm:$0xff]
  %v39 = vld [vmem:[%s0 + $0x68] sm:$0xff]
  %v40 = vld [vmem:[%s0 + $0x70] sm:$0xff]
  %v41 = vld [vmem:[%s0 + $0x78] sm:$0xff]
  %v42 = vpack.c.bf16 %v27, %v26
  %v43 = vpack.c.bf16 %v29, %v28
  %v44 = vpack.c.bf16 %v31, %v30
  %v45 = vpack.c.bf16 %v33, %v32
  %v46 = vpack.c.bf16 %v35, %v34
  %v47 = vpack.c.bf16 %v37, %v36
  %v48 = vpack.c.bf16 %v39, %v38
  %v49 = vpack.c.bf16 %v41, %v40
  %v50 = vld [vmem:[%s1] sm:$0xf]
  %v51 = vld [vmem:[%s1 + $0x4] sm:$0xf]
  %v52 = vld [vmem:[%s3] sm:$0x1]
  %v54 = vlaneseq
  %v55 = vshrl.u32 %v54, 7
  %v56 = vsub.s32 0, %v55
  %v57 = vrot.slane %v52, %v56
  %v61 = vunpack.c.l.b16 %v50
  %v62 = vunpack.c.l.b16 %v51
  %v63 = vpack.c.b16 %v62, %v61
  %vm65 = vcmask 130048
  %v67 = vsel %vm65, %v42, 0
  %v70 = vsel %vm65, %v43, 0
  %v73 = vsel %vm65, %v44, 0
  %v76 = vsel %vm65, %v45, 0
  %v79 = vsel %vm65, %v46, 0
  %v82 = vsel %vm65, %v47, 0
  %v85 = vsel %vm65, %v48, 0
  %v88 = vsel %vm65, %v49, 0
  %90 = vmatprep.subr.bf16.mxu0 0
  %91 = vmatpush1.bf16.msra.mxu0 %v63
  %92 = vmatprep.subr.bf16.mxu0 0
  %93 = vmatpush1.bf16.msra.mxu0 0
  %94 = vmatprep.subr.bf16.mxu0 0
  %95 = vmatpush1.bf16.msra.mxu0 0
  %96 = vmatprep.subr.bf16.mxu0 0
  %97 = vmatpush1.bf16.msra.mxu0 0
  %98 = vmatprep.subr.bf16.mxu0 0
  %99 = vmatpush1.bf16.msra.mxu0 0
  %100 = vmatprep.subr.bf16.mxu0 0
  %101 = vmatpush1.bf16.msra.mxu0 0
  %102 = vmatprep.subr.bf16.mxu0 0
  %103 = vmatpush1.bf16.msra.mxu0 0
  %104 = vmatprep.subr.bf16.mxu0 0
  %105 = vmatpush1.bf16.msra.mxu0 0
  %106 = vmatprep.subr.bf16.mxu0 0
  %107 = vmatpush1.bf16.msra.mxu0 0
  %108 = vmatprep.subr.bf16.mxu0 0
  %109 = vmatpush1.bf16.msra.mxu0 0
  %110 = vmatprep.subr.bf16.mxu0 0
  %111 = vmatpush1.bf16.msra.mxu0 0
  %112 = vmatprep.subr.bf16.mxu0 0
  %113 = vmatpush1.bf16.msra.mxu0 0
  %114 = vmatprep.subr.bf16.mxu0 0
  %115 = vmatpush1.bf16.msra.mxu0 0
  %116 = vmatprep.subr.bf16.mxu0 0
  %117 = vmatpush1.bf16.msra.mxu0 0
  %118 = vmatprep.subr.bf16.mxu0 0
  %119 = vmatpush1.bf16.msra.mxu0 0
  %120 = vmatprep.subr.bf16.mxu0 0
  %121 = vmatpush1.bf16.msra.mxu0 0
  %122 = vmatprep.mubr.bf16.mxu0 0
  %123 = vmatmul.mubr.bf16.gmra.mrb[0].mxu0 %v67
  %v124 = vpop.f32.mrb[0].mxu0
  %v125 = vadd.f32 %v57, %v124
  %v126 = vpop.f32.mrb[0].mxu0
  %v127 = vpop.f32.mrb[0].mxu0
  %v128 = vadd.f32 %v57, %v127
  %v129 = vpop.f32.mrb[0].mxu0
  %130 = vmatprep.mubr.bf16.mxu0 0
  %131 = vmatmul.mubr.bf16.gmra.mrb[0].mxu0 %v70
  %v132 = vpop.f32.mrb[0].mxu0
  %v133 = vadd.f32 %v57, %v132
  %v134 = vpop.f32.mrb[0].mxu0
  %v135 = vpop.f32.mrb[0].mxu0
  %v136 = vadd.f32 %v57, %v135
  %v137 = vpop.f32.mrb[0].mxu0
  %138 = vmatprep.mubr.bf16.mxu0 0
  %139 = vmatmul.mubr.bf16.gmra.mrb[0].mxu0 %v73
  %v140 = vpop.f32.mrb[0].mxu0
  %v141 = vadd.f32 %v57, %v140
  %v142 = vpop.f32.mrb[0].mxu0
  %v143 = vpop.f32.mrb[0].mxu0
  %v144 = vadd.f32 %v57, %v143
  %v145 = vpop.f32.mrb[0].mxu0
  %146 = vmatprep.mubr.bf16.mxu0 0
  %147 = vmatmul.mubr.bf16.gmra.mrb[0].mxu0 %v76
  %v148 = vpop.f32.mrb[0].mxu0
  %v149 = vadd.f32 %v57, %v148
  %v150 = vpop.f32.mrb[0].mxu0
  %v151 = vpop.f32.mrb[0].mxu0
  %v152 = vadd.f32 %v57, %v151
  %v153 = vpop.f32.mrb[0].mxu0
  %154 = vmatprep.mubr.bf16.mxu0 0
  %155 = vmatmul.mubr.bf16.gmra.mrb[0].mxu0 %v79
  %v156 = vpop.f32.mrb[0].mxu0
  %v157 = vadd.f32 %v57, %v156
  %v158 = vpop.f32.mrb[0].mxu0
  %v159 = vpop.f32.mrb[0].mxu0
  %v160 = vadd.f32 %v57, %v159
  %v161 = vpop.f32.mrb[0].mxu0
  %162 = vmatprep.mubr.bf16.mxu0 0
  %163 = vmatmul.mubr.bf16.gmra.mrb[0].mxu0 %v82
  %v164 = vpop.f32.mrb[0].mxu0
  %v165 = vadd.f32 %v57, %v164
  %v166 = vpop.f32.mrb[0].mxu0
  %v167 = vpop.f32.mrb[0].mxu0
  %v168 = vadd.f32 %v57, %v167
  %v169 = vpop.f32.mrb[0].mxu0
  %170 = vmatprep.mubr.bf16.mxu0 0
  %171 = vmatmul.mubr.bf16.gmra.mrb[0].mxu0 %v85
  %v172 = vpop.f32.mrb[0].mxu0
  %v173 = vadd.f32 %v57, %v172
  %v174 = vpop.f32.mrb[0].mxu0
  %v175 = vpop.f32.mrb[0].mxu0
  %v176 = vadd.f32 %v57, %v175
  %v177 = vpop.f32.mrb[0].mxu0
  %178 = vmatprep.mubr.bf16.mxu0 0
  %179 = vmatmul.mubr.bf16.gmra.mrb[0].mxu0 %v88
  %v180 = vpop.f32.mrb[0].mxu0
  %v181 = vadd.f32 %v57, %v180
  %v182 = vpop.f32.mrb[0].mxu0
  %v183 = vpop.f32.mrb[0].mxu0
  %v184 = vadd.f32 %v57, %v183
  %v185 = vpop.f32.mrb[0].mxu0
  %186 = vdwg.mxu0
  %v187 = vmax.f32 %v125, 0.0
  %v188 = vmax.f32 %v128, 0.0
  %v189 = vmax.f32 %v133, 0.0
  %v190 = vmax.f32 %v136, 0.0
  %v191 = vmax.f32 %v141, 0.0
  %v192 = vmax.f32 %v144, 0.0
  %v193 = vmax.f32 %v149, 0.0
  %v194 = vmax.f32 %v152, 0.0
  %v195 = vmax.f32 %v157, 0.0
  %v196 = vmax.f32 %v160, 0.0
  %v197 = vmax.f32 %v165, 0.0
  %v198 = vmax.f32 %v168, 0.0
  %v199 = vmax.f32 %v173, 0.0
  %v200 = vmax.f32 %v176, 0.0
  %v201 = vmax.f32 %v181, 0.0
  %v202 = vmax.f32 %v184, 0.0
  %v203 = vpack.c.bf16 %v188, %v187
  %v204 = vpack.c.bf16 %v190, %v189
  %v205 = vpack.c.bf16 %v192, %v191
  %v206 = vpack.c.bf16 %v194, %v193
  %v207 = vpack.c.bf16 %v196, %v195
  %v208 = vpack.c.bf16 %v198, %v197
  %v209 = vpack.c.bf16 %v200, %v199
  %v210 = vpack.c.bf16 %v202, %v201
  %v211 = vld [vmem:[%s2] sm:$0xf]
  %v212 = vld [vmem:[%s2 + $0x4] sm:$0xf]
  %v213 = vld [vmem:[%s2 + $0x8] sm:$0xf]
  %v214 = vld [vmem:[%s2 + $0xc] sm:$0xf]
  %v215 = vld [vmem:[%s2 + $0x10] sm:$0xf]
  %v216 = vld [vmem:[%s2 + $0x14] sm:$0xf]
  %v217 = vld [vmem:[%s2 + $0x18] sm:$0xf]
  %v218 = vld [vmem:[%s2 + $0x1c] sm:$0xf]
  %v219 = vld [vmem:[%s2 + $0x20] sm:$0xf]
  %v220 = vld [vmem:[%s2 + $0x24] sm:$0xf]
  %v221 = vld [vmem:[%s2 + $0x28] sm:$0xf]
  %v222 = vld [vmem:[%s2 + $0x2c] sm:$0xf]
  %v223 = vld [vmem:[%s2 + $0x30] sm:$0xf]
  %v224 = vld [vmem:[%s2 + $0x34] sm:$0xf]
  %v225 = vld [vmem:[%s2 + $0x38] sm:$0xf]
  %v226 = vld [vmem:[%s2 + $0x3c] sm:$0xf]
  %s227 = scalar_lea.vmem %s3, 1
  %v228 = vld [vmem:[%s227] sm:$0x1]
  %v230 = vlaneseq
  %v231 = vshrl.u32 %v230, 7
  %v232 = vsub.s32 0, %v231
  %v233 = vrot.slane %v228, %v232
  %v251 = vunpack.c.l.b16 %v211
  %v252 = vunpack.c.l.b16 %v212
  %v253 = vunpack.c.l.b16 %v213
  %v254 = vunpack.c.l.b16 %v214
  %v255 = vunpack.c.l.b16 %v215
  %v256 = vunpack.c.l.b16 %v216
  %v257 = vunpack.c.l.b16 %v217
  %v258 = vunpack.c.l.b16 %v218
  %v259 = vunpack.c.l.b16 %v219
  %v260 = vunpack.c.l.b16 %v220
  %v261 = vunpack.c.l.b16 %v221
  %v262 = vunpack.c.l.b16 %v222
  %v263 = vunpack.c.l.b16 %v223
  %v264 = vunpack.c.l.b16 %v224
  %v265 = vunpack.c.l.b16 %v225
  %v266 = vunpack.c.l.b16 %v226
  %v267 = vpack.c.b16 %v252, %v251
  %v268 = vpack.c.b16 %v254, %v253
  %v269 = vpack.c.b16 %v256, %v255
  %v270 = vpack.c.b16 %v258, %v257
  %v271 = vpack.c.b16 %v260, %v259
  %v272 = vpack.c.b16 %v262, %v261
  %v273 = vpack.c.b16 %v264, %v263
  %v274 = vpack.c.b16 %v266, %v265
  %283 = vmatprep.subr.bf16.mxu0 0
  %284 = vmatpush1.bf16.msra.mxu0 %v267
  %285 = vmatprep.subr.bf16.mxu0 0
  %286 = vmatpush1.bf16.msra.mxu0 %v268
  %287 = vmatprep.subr.bf16.mxu0 0
  %288 = vmatpush1.bf16.msra.mxu0 %v269
  %289 = vmatprep.subr.bf16.mxu0 0
  %290 = vmatpush1.bf16.msra.mxu0 %v270
  %291 = vmatprep.subr.bf16.mxu0 0
  %292 = vmatpush1.bf16.msra.mxu0 %v271
  %293 = vmatprep.subr.bf16.mxu0 0
  %294 = vmatpush1.bf16.msra.mxu0 %v272
  %295 = vmatprep.subr.bf16.mxu0 0
  %296 = vmatpush1.bf16.msra.mxu0 %v273
  %297 = vmatprep.subr.bf16.mxu0 0
  %298 = vmatpush1.bf16.msra.mxu0 %v274
  %299 = vmatprep.subr.bf16.mxu0 0
  %300 = vmatpush1.bf16.msra.mxu0 0
  %301 = vmatprep.subr.bf16.mxu0 0
  %302 = vmatpush1.bf16.msra.mxu0 0
  %303 = vmatprep.subr.bf16.mxu0 0
  %304 = vmatpush1.bf16.msra.mxu0 0
  %305 = vmatprep.subr.bf16.mxu0 0
  %306 = vmatpush1.bf16.msra.mxu0 0
  %307 = vmatprep.subr.bf16.mxu0 0
  %308 = vmatpush1.bf16.msra.mxu0 0
  %309 = vmatprep.subr.bf16.mxu0 0
  %310 = vmatpush1.bf16.msra.mxu0 0
  %311 = vmatprep.subr.bf16.mxu0 0
  %312 = vmatpush1.bf16.msra.mxu0 0
  %313 = vmatprep.subr.bf16.mxu0 0
  %314 = vmatpush1.bf16.msra.mxu0 0
  %315 = vmatprep.mubr.bf16.mxu0 0
  %316 = vmatmul.mubr.bf16.gmra.mrb[0].mxu0 %v203
  %v317 = vpop.f32.mrb[0].mxu0
  %v318 = vadd.f32 %v233, %v317
  %v319 = vpop.f32.mrb[0].mxu0
  %v320 = vpop.f32.mrb[0].mxu0
  %v321 = vadd.f32 %v233, %v320
  %v322 = vpop.f32.mrb[0].mxu0
  %323 = vmatprep.mubr.bf16.mxu0 0
  %324 = vmatmul.mubr.bf16.gmra.mrb[0].mxu0 %v204
  %v325 = vpop.f32.mrb[0].mxu0
  %v326 = vadd.f32 %v233, %v325
  %v327 = vpop.f32.mrb[0].mxu0
  %v328 = vpop.f32.mrb[0].mxu0
  %v329 = vadd.f32 %v233, %v328
  %v330 = vpop.f32.mrb[0].mxu0
  %331 = vmatprep.mubr.bf16.mxu0 0
  %332 = vmatmul.mubr.bf16.gmra.mrb[0].mxu0 %v205
  %v333 = vpop.f32.mrb[0].mxu0
  %v334 = vadd.f32 %v233, %v333
  %v335 = vpop.f32.mrb[0].mxu0
  %v336 = vpop.f32.mrb[0].mxu0
  %v337 = vadd.f32 %v233, %v336
  %v338 = vpop.f32.mrb[0].mxu0
  %339 = vmatprep.mubr.bf16.mxu0 0
  %340 = vmatmul.mubr.bf16.gmra.mrb[0].mxu0 %v206
  %v341 = vpop.f32.mrb[0].mxu0
  %v342 = vadd.f32 %v233, %v341
  %v343 = vpop.f32.mrb[0].mxu0
  %v344 = vpop.f32.mrb[0].mxu0
  %v345 = vadd.f32 %v233, %v344
  %v346 = vpop.f32.mrb[0].mxu0
  %347 = vmatprep.mubr.bf16.mxu0 0
  %348 = vmatmul.mubr.bf16.gmra.mrb[0].mxu0 %v207
  %v349 = vpop.f32.mrb[0].mxu0
  %v350 = vadd.f32 %v233, %v349
  %v351 = vpop.f32.mrb[0].mxu0
  %v352 = vpop.f32.mrb[0].mxu0
  %v353 = vadd.f32 %v233, %v352
  %v354 = vpop.f32.mrb[0].mxu0
  %355 = vmatprep.mubr.bf16.mxu0 0
  %356 = vmatmul.mubr.bf16.gmra.mrb[0].mxu0 %v208
  %v357 = vpop.f32.mrb[0].mxu0
  %v358 = vadd.f32 %v233, %v357
  %v359 = vpop.f32.mrb[0].mxu0
  %v360 = vpop.f32.mrb[0].mxu0
  %v361 = vadd.f32 %v233, %v360
  %v362 = vpop.f32.mrb[0].mxu0
  %363 = vmatprep.mubr.bf16.mxu0 0
  %364 = vmatmul.mubr.bf16.gmra.mrb[0].mxu0 %v209
  %v365 = vpop.f32.mrb[0].mxu0
  %v366 = vadd.f32 %v233, %v365
  %v367 = vpop.f32.mrb[0].mxu0
  %v368 = vpop.f32.mrb[0].mxu0
  %v369 = vadd.f32 %v233, %v368
  %v370 = vpop.f32.mrb[0].mxu0
  %371 = vmatprep.mubr.bf16.mxu0 0
  %372 = vmatmul.mubr.bf16.gmra.mrb[0].mxu0 %v210
  %v373 = vpop.f32.mrb[0].mxu0
  %v374 = vadd.f32 %v233, %v373
  %v375 = vpop.f32.mrb[0].mxu0
  %v376 = vpop.f32.mrb[0].mxu0
  %v377 = vadd.f32 %v233, %v376
  %v378 = vpop.f32.mrb[0].mxu0
  %379 = vdwg.mxu0
  %v380 = vmax.f32 %v318, 0.0
  %v381 = vmax.f32 %v321, 0.0
  %v382 = vmax.f32 %v326, 0.0
  %v383 = vmax.f32 %v329, 0.0
  %v384 = vmax.f32 %v334, 0.0
  %v385 = vmax.f32 %v337, 0.0
  %v386 = vmax.f32 %v342, 0.0
  %v387 = vmax.f32 %v345, 0.0
  %v388 = vmax.f32 %v350, 0.0
  %v389 = vmax.f32 %v353, 0.0
  %v390 = vmax.f32 %v358, 0.0
  %v391 = vmax.f32 %v361, 0.0
  %v392 = vmax.f32 %v366, 0.0
  %v393 = vmax.f32 %v369, 0.0
  %v394 = vmax.f32 %v374, 0.0
  %v395 = vmax.f32 %v377, 0.0
  %v396 = vpack.c.bf16 %v381, %v380
  %v397 = vpack.c.bf16 %v383, %v382
  %v398 = vpack.c.bf16 %v385, %v384
  %v399 = vpack.c.bf16 %v387, %v386
  %v400 = vpack.c.bf16 %v389, %v388
  %v401 = vpack.c.bf16 %v391, %v390
  %v402 = vpack.c.bf16 %v393, %v392
  %v403 = vpack.c.bf16 %v395, %v394
  %s404 = scalar_lea.vmem %s2, 64
  %v405 = vld [vmem:[%s404] sm:$0xf]
  %v406 = vld [vmem:[%s404 + $0x4] sm:$0xf]
  %v407 = vld [vmem:[%s404 + $0x8] sm:$0xf]
  %v408 = vld [vmem:[%s404 + $0xc] sm:$0xf]
  %v409 = vld [vmem:[%s404 + $0x10] sm:$0xf]
  %v410 = vld [vmem:[%s404 + $0x14] sm:$0xf]
  %v411 = vld [vmem:[%s404 + $0x18] sm:$0xf]
  %v412 = vld [vmem:[%s404 + $0x1c] sm:$0xf]
  %v413 = vld [vmem:[%s404 + $0x20] sm:$0xf]
  %v414 = vld [vmem:[%s404 + $0x24] sm:$0xf]
  %v415 = vld [vmem:[%s404 + $0x28] sm:$0xf]
  %v416 = vld [vmem:[%s404 + $0x2c] sm:$0xf]
  %v417 = vld [vmem:[%s404 + $0x30] sm:$0xf]
  %v418 = vld [vmem:[%s404 + $0x34] sm:$0xf]
  %v419 = vld [vmem:[%s404 + $0x38] sm:$0xf]
  %v420 = vld [vmem:[%s404 + $0x3c] sm:$0xf]
  %s421 = scalar_lea.vmem %s3, 2
  %v422 = vld [vmem:[%s421] sm:$0x1]
  %v424 = vlaneseq
  %v425 = vshrl.u32 %v424, 7
  %v426 = vsub.s32 0, %v425
  %v427 = vrot.slane %v422, %v426
  %v445 = vunpack.c.l.b16 %v405
  %v446 = vunpack.c.l.b16 %v406
  %v447 = vunpack.c.l.b16 %v407
  %v448 = vunpack.c.l.b16 %v408
  %v449 = vunpack.c.l.b16 %v409
  %v450 = vunpack.c.l.b16 %v410
  %v451 = vunpack.c.l.b16 %v411
  %v452 = vunpack.c.l.b16 %v412
  %v453 = vunpack.c.l.b16 %v413
  %v454 = vunpack.c.l.b16 %v414
  %v455 = vunpack.c.l.b16 %v415
  %v456 = vunpack.c.l.b16 %v416
  %v457 = vunpack.c.l.b16 %v417
  %v458 = vunpack.c.l.b16 %v418
  %v459 = vunpack.c.l.b16 %v419
  %v460 = vunpack.c.l.b16 %v420
  %v461 = vpack.c.b16 %v446, %v445
  %v462 = vpack.c.b16 %v448, %v447
  %v463 = vpack.c.b16 %v450, %v449
  %v464 = vpack.c.b16 %v452, %v451
  %v465 = vpack.c.b16 %v454, %v453
  %v466 = vpack.c.b16 %v456, %v455
  %v467 = vpack.c.b16 %v458, %v457
  %v468 = vpack.c.b16 %v460, %v459
  %477 = vmatprep.subr.bf16.mxu0 0
  %478 = vmatpush1.bf16.msra.mxu0 %v461
  %479 = vmatprep.subr.bf16.mxu0 0
  %480 = vmatpush1.bf16.msra.mxu0 %v462
  %481 = vmatprep.subr.bf16.mxu0 0
  %482 = vmatpush1.bf16.msra.mxu0 %v463
  %483 = vmatprep.subr.bf16.mxu0 0
  %484 = vmatpush1.bf16.msra.mxu0 %v464
  %485 = vmatprep.subr.bf16.mxu0 0
  %486 = vmatpush1.bf16.msra.mxu0 %v465
  %487 = vmatprep.subr.bf16.mxu0 0
  %488 = vmatpush1.bf16.msra.mxu0 %v466
  %489 = vmatprep.subr.bf16.mxu0 0
  %490 = vmatpush1.bf16.msra.mxu0 %v467
  %491 = vmatprep.subr.bf16.mxu0 0
  %492 = vmatpush1.bf16.msra.mxu0 %v468
  %493 = vmatprep.subr.bf16.mxu0 0
  %494 = vmatpush1.bf16.msra.mxu0 0
  %495 = vmatprep.subr.bf16.mxu0 0
  %496 = vmatpush1.bf16.msra.mxu0 0
  %497 = vmatprep.subr.bf16.mxu0 0
  %498 = vmatpush1.bf16.msra.mxu0 0
  %499 = vmatprep.subr.bf16.mxu0 0
  %500 = vmatpush1.bf16.msra.mxu0 0
  %501 = vmatprep.subr.bf16.mxu0 0
  %502 = vmatpush1.bf16.msra.mxu0 0
  %503 = vmatprep.subr.bf16.mxu0 0
  %504 = vmatpush1.bf16.msra.mxu0 0
  %505 = vmatprep.subr.bf16.mxu0 0
  %506 = vmatpush1.bf16.msra.mxu0 0
  %507 = vmatprep.subr.bf16.mxu0 0
  %508 = vmatpush1.bf16.msra.mxu0 0
  %509 = vmatprep.mubr.bf16.mxu0 0
  %510 = vmatmul.mubr.bf16.gmra.mrb[0].mxu0 %v396
  %v511 = vpop.f32.mrb[0].mxu0
  %v512 = vadd.f32 %v427, %v511
  %v513 = vpop.f32.mrb[0].mxu0
  %v514 = vpop.f32.mrb[0].mxu0
  %v515 = vadd.f32 %v427, %v514
  %v516 = vpop.f32.mrb[0].mxu0
  %517 = vmatprep.mubr.bf16.mxu0 0
  %518 = vmatmul.mubr.bf16.gmra.mrb[0].mxu0 %v397
  %v519 = vpop.f32.mrb[0].mxu0
  %v520 = vadd.f32 %v427, %v519
  %v521 = vpop.f32.mrb[0].mxu0
  %v522 = vpop.f32.mrb[0].mxu0
  %v523 = vadd.f32 %v427, %v522
  %v524 = vpop.f32.mrb[0].mxu0
  %525 = vmatprep.mubr.bf16.mxu0 0
  %526 = vmatmul.mubr.bf16.gmra.mrb[0].mxu0 %v398
  %v527 = vpop.f32.mrb[0].mxu0
  %v528 = vadd.f32 %v427, %v527
  %v529 = vpop.f32.mrb[0].mxu0
  %v530 = vpop.f32.mrb[0].mxu0
  %v531 = vadd.f32 %v427, %v530
  %v532 = vpop.f32.mrb[0].mxu0
  %533 = vmatprep.mubr.bf16.mxu0 0
  %534 = vmatmul.mubr.bf16.gmra.mrb[0].mxu0 %v399
  %v535 = vpop.f32.mrb[0].mxu0
  %v536 = vadd.f32 %v427, %v535
  %v537 = vpop.f32.mrb[0].mxu0
  %v538 = vpop.f32.mrb[0].mxu0
  %v539 = vadd.f32 %v427, %v538
  %v540 = vpop.f32.mrb[0].mxu0
  %541 = vmatprep.mubr.bf16.mxu0 0
  %542 = vmatmul.mubr.bf16.gmra.mrb[0].mxu0 %v400
  %v543 = vpop.f32.mrb[0].mxu0
  %v544 = vadd.f32 %v427, %v543
  %v545 = vpop.f32.mrb[0].mxu0
  %v546 = vpop.f32.mrb[0].mxu0
  %v547 = vadd.f32 %v427, %v546
  %v548 = vpop.f32.mrb[0].mxu0
  %549 = vmatprep.mubr.bf16.mxu0 0
  %550 = vmatmul.mubr.bf16.gmra.mrb[0].mxu0 %v401
  %v551 = vpop.f32.mrb[0].mxu0
  %v552 = vadd.f32 %v427, %v551
  %v553 = vpop.f32.mrb[0].mxu0
  %v554 = vpop.f32.mrb[0].mxu0
  %v555 = vadd.f32 %v427, %v554
  %v556 = vpop.f32.mrb[0].mxu0
  %557 = vmatprep.mubr.bf16.mxu0 0
  %558 = vmatmul.mubr.bf16.gmra.mrb[0].mxu0 %v402
  %v559 = vpop.f32.mrb[0].mxu0
  %v560 = vadd.f32 %v427, %v559
  %v561 = vpop.f32.mrb[0].mxu0
  %v562 = vpop.f32.mrb[0].mxu0
  %v563 = vadd.f32 %v427, %v562
  %v564 = vpop.f32.mrb[0].mxu0
  %565 = vmatprep.mubr.bf16.mxu0 0
  %566 = vmatmul.mubr.bf16.gmra.mrb[0].mxu0 %v403
  %v567 = vpop.f32.mrb[0].mxu0
  %v568 = vadd.f32 %v427, %v567
  %v569 = vpop.f32.mrb[0].mxu0
  %v570 = vpop.f32.mrb[0].mxu0
  %v571 = vadd.f32 %v427, %v570
  %v572 = vpop.f32.mrb[0].mxu0
  %573 = vdwg.mxu0
  %v574 = vmax.f32 %v512, 0.0
  %v575 = vmax.f32 %v515, 0.0
  %v576 = vmax.f32 %v520, 0.0
  %v577 = vmax.f32 %v523, 0.0
  %v578 = vmax.f32 %v528, 0.0
  %v579 = vmax.f32 %v531, 0.0
  %v580 = vmax.f32 %v536, 0.0
  %v581 = vmax.f32 %v539, 0.0
  %v582 = vmax.f32 %v544, 0.0
  %v583 = vmax.f32 %v547, 0.0
  %v584 = vmax.f32 %v552, 0.0
  %v585 = vmax.f32 %v555, 0.0
  %v586 = vmax.f32 %v560, 0.0
  %v587 = vmax.f32 %v563, 0.0
  %v588 = vmax.f32 %v568, 0.0
  %v589 = vmax.f32 %v571, 0.0
  %v590 = vld [vmem:[%s4] sm:$0x1]
  %v591 = vld [vmem:[#allocation2] sm:$0x1]
  %593 = vset.pattern.permute.xlu0 0
  %594 = vperm.xlu0 %593, %v591
  %v595 = vpop.permute.xlu0 %594
  %v597 = vlaneseq
  %v598 = vshrl.u32 %v597, 7
  %v599 = vsub.s32 0, %v598
  %v600 = vrot.slane %v595, %v599
  %601 = vmatprep.subr.mxu0 0.0
  %602 = vmatpush1.xpose.msra.mxu0 %v574
  %603 = vmatprep.subr.mxu0 0.0
  %604 = vmatpush1.xpose.msra.mxu0 %v575
  %605 = vmatprep.subr.mxu0 0.0
  %606 = vmatpush1.xpose.msra.mxu0 %v576
  %607 = vmatprep.subr.mxu0 0.0
  %608 = vmatpush1.xpose.msra.mxu0 %v577
  %609 = vmatprep.subr.mxu0 0.0
  %610 = vmatpush1.xpose.msra.mxu0 %v578
  %611 = vmatprep.subr.mxu0 0.0
  %612 = vmatpush1.xpose.msra.mxu0 %v579
  %613 = vmatprep.subr.mxu0 0.0
  %614 = vmatpush1.xpose.msra.mxu0 %v580
  %615 = vmatprep.subr.mxu0 0.0
  %616 = vmatpush1.xpose.msra.mxu0 %v581
  %617 = vmatprep.subr.mxu0 0.0
  %618 = vmatpush1.xpose.msra.mxu0 %v582
  %619 = vmatprep.subr.mxu0 0.0
  %620 = vmatpush1.xpose.msra.mxu0 %v583
  %621 = vmatprep.subr.mxu0 0.0
  %622 = vmatpush1.xpose.msra.mxu0 %v584
  %623 = vmatprep.subr.mxu0 0.0
  %624 = vmatpush1.xpose.msra.mxu0 %v585
  %625 = vmatprep.subr.mxu0 0.0
  %626 = vmatpush1.xpose.msra.mxu0 %v586
  %627 = vmatprep.subr.mxu0 0.0
  %628 = vmatpush1.xpose.msra.mxu0 %v587
  %629 = vmatprep.subr.mxu0 0.0
  %630 = vmatpush1.xpose.msra.mxu0 %v588
  %631 = vmatprep.subr.mxu0 0.0
  %632 = vmatpush1.xpose.msra.mxu0 %v589
  %633 = vmatprep.subr.mxu0 0.0
  %634 = vmatpush1.xpose.msra.mxu0 0.0
  %635 = vmatprep.subr.mxu0 0.0
  %636 = vmatpush1.xpose.msra.mxu0 0.0
  %637 = vmatprep.subr.mxu0 0.0
  %638 = vmatpush1.xpose.msra.mxu0 0.0
  %639 = vmatprep.subr.mxu0 0.0
  %640 = vmatpush1.xpose.msra.mxu0 0.0
  %641 = vmatprep.subr.mxu0 0.0
  %642 = vmatpush1.xpose.msra.mxu0 0.0
  %643 = vmatprep.subr.mxu0 0.0
  %644 = vmatpush1.xpose.msra.mxu0 0.0
  %645 = vmatprep.subr.mxu0 0.0
  %646 = vmatpush1.xpose.msra.mxu0 0.0
  %647 = vmatprep.subr.mxu0 0.0
  %648 = vmatpush1.xpose.msra.mxu0 0.0
  %649 = vmatprep.subr.mxu0 0.0
  %650 = vmatpush1.xpose.msra.mxu0 0.0
  %651 = vmatprep.subr.mxu0 0.0
  %652 = vmatpush1.xpose.msra.mxu0 0.0
  %653 = vmatprep.subr.mxu0 0.0
  %654 = vmatpush1.xpose.msra.mxu0 0.0
  %655 = vmatprep.subr.mxu0 0.0
  %656 = vmatpush1.xpose.msra.mxu0 0.0
  %657 = vmatprep.subr.mxu0 0.0
  %658 = vmatpush1.xpose.msra.mxu0 0.0
  %659 = vmatprep.subr.mxu0 0.0
  %660 = vmatpush1.xpose.msra.mxu0 0.0
  %661 = vmatprep.subr.mxu0 0.0
  %662 = vmatpush1.xpose.msra.mxu0 0.0
  %663 = vmatprep.subr.mxu0 0.0
  %664 = vmatpush1.xpose.msra.mxu0 0.0
  %665 = vmatprep.mubr.f32.mxu0 0.0
  %666 = vmatmul.mubr.f32.gmra.mrb[0].mxu0 %v590
  %v667 = vpop.f32.mrb[0].mxu0
  %v668 = vadd.f32 %v600, %v667
  %v669 = vpop.f32.mrb[0].mxu0
  %670 = vdwg.mxu0
  %671 = vst [vmem:[%s6] sm:$0x1] %v668
  // Predicated region
  $region26: #{regression_net_forward.1} parent=0 // pred_check
    _
  $region27: #{regression_net_forward.1} parent=0 // pred_check_branch
    %673 = sbr.rel (0) target = $region29
  $region28: #{regression_net_forward.1} parent=0 // pred_region
    _
  $region29: #{regression_net_forward.1} parent=0 // pred_fallthru
    _
  // Predicated region
  $region30: #{regression_net_forward.1} parent=0 // pred_check
    _
  $region31: #{regression_net_forward.1} parent=0 // pred_check_branch
    %675 = sbr.rel (0) target = $region33
  $region32: #{regression_net_forward.1} parent=0 // pred_region
    _
  $region33: #{regression_net_forward.1} parent=0 // pred_fallthru
    _

</llo_original>
